<compile_context>
chip_gen: v7x
topology: tpu7x:2x2x1
jax: 0.10.0
libtpu: 0.0.40
codegen_flags: <defaults>
</compile_context>

<pallas_src>
import functools

import jax
import jax.numpy as jnp
import numpy as np
from jax.experimental import pallas as pl
from jax.experimental.pallas import tpu as pltpu

# ---- static config (small, consistent with the module) ----
BATCH = 2
SRC_LEN = 8
OUTPUT_DIM = 32   # vocab size
EMB_DIM = 16
HIDDEN_DIM = 32
N_LAYERS = 2      # kernel below is written for exactly 2 layers


def decoder_kernel(B, S, H, E, V,
                   tok_ref, hc_ref, enc_ref, emb_ref,
                   pattn_ref, plstm_ref, pout_ref,
                   pred_ref, hcout_ref):
    f32 = jnp.float32

    # ---- embedding gather: B dynamic row reads driven by SMEM token scalars ----
    embedded = jnp.concatenate(
        [emb_ref[pl.ds(tok_ref[b], 1), :] for b in range(B)], axis=0)        # (B, E)
    # dropout(embedded): identity at inference

    # ---- previous state (packed rows: h_layer0 | h_layer1 | c_layer0 | c_layer1) ----
    h0 = hc_ref[0 * B:1 * B, :]                                              # (B, H)
    h1 = hc_ref[1 * B:2 * B, :]                                              # top layer hidden
    c0 = hc_ref[2 * B:3 * B, :]
    c1 = hc_ref[3 * B:4 * B, :]

    # ---- additive attention (weights pre-transposed to (in, out) layout) ----
    waht = pattn_ref[0:H, :]                                                 # (H, H)
    waet = pattn_ref[H:2 * H, :]                                             # (H, H)
    ba = pattn_ref[2 * H:2 * H + 1, :]                                       # (1, H)
    va = pattn_ref[2 * H + 1:2 * H + 2, :]                                   # (1, H)

    enc = enc_ref[...]                                                       # (B*S, H)
    hp = jnp.dot(h1, waht, preferred_element_type=f32)                       # (B, H)
    ep = jnp.dot(enc, waet, preferred_element_type=f32)                      # (B*S, H)
    energy = jnp.tanh(ep.reshape(B, S, H) + hp[:, None, :] + ba)             # (B, S, H)
    scores = jnp.sum(energy * va, axis=-1)                                   # (B, S)
    m = jnp.max(scores, axis=-1, keepdims=True)
    e = jnp.exp(scores - m)
    attn = e / jnp.sum(e, axis=-1, keepdims=True)                            # (B, S)
    # context[b] = attn[b] @ enc[b*S:(b+1)*S]  (B tiny matmuls, unrolled)
    context = jnp.concatenate(
        [jnp.dot(attn[b:b + 1, :], enc[b * S:(b + 1) * S, :],
                 preferred_element_type=f32) for b in range(B)], axis=0)     # (B, H)

    # ---- fused 2-layer LSTM step (gate order i, f, g, o, matching PyTorch) ----
    W0t = plstm_ref[0:E + 2 * H, :]                                          # (E+2H, 4H)
    W1t = plstm_ref[E + 2 * H:E + 4 * H, :]                                  # (2H, 4H)
    b0 = plstm_ref[E + 4 * H:E + 4 * H + 1, :]                               # (1, 4H) = bih0+bhh0
    b1 = plstm_ref[E + 4 * H + 1:E + 4 * H + 2, :]                           # (1, 4H) = bih1+bhh1

    x0 = jnp.concatenate([embedded, context, h0], axis=1)                    # (B, E+2H)
    g0 = jnp.dot(x0, W0t, preferred_element_type=f32) + b0                   # (B, 4H)
    i_0 = jax.nn.sigmoid(g0[:, 0 * H:1 * H])
    f_0 = jax.nn.sigmoid(g0[:, 1 * H:2 * H])
    gg0 = jnp.tanh(g0[:, 2 * H:3 * H])
    o_0 = jax.nn.sigmoid(g0[:, 3 * H:4 * H])
    c0n = f_0 * c0 + i_0 * gg0
    h0n = o_0 * jnp.tanh(c0n)

    # inter-layer dropout: identity at inference
    x1 = jnp.concatenate([h0n, h1], axis=1)                                  # (B, 2H)
    g1 = jnp.dot(x1, W1t, preferred_element_type=f32) + b1                   # (B, 4H)
    i_1 = jax.nn.sigmoid(g1[:, 0 * H:1 * H])
    f_1 = jax.nn.sigmoid(g1[:, 1 * H:2 * H])
    gg1 = jnp.tanh(g1[:, 2 * H:3 * H])
    o_1 = jax.nn.sigmoid(g1[:, 3 * H:4 * H])
    c1n = f_1 * c1 + i_1 * gg1
    h1n = o_1 * jnp.tanh(c1n)

    # ---- fc_out + merged state writeback ----
    woutt = pout_ref[0:H, :]                                                 # (H, V)
    bout = pout_ref[H:H + 1, :]                                              # (1, V)
    pred_ref[...] = jnp.dot(h1n, woutt, preferred_element_type=f32) + bout   # (B, V)
    hcout_ref[...] = jnp.concatenate([h0n, h1n, c0n, c1n], axis=0)           # (4B, H)


def init_params(key):
    ks = jax.random.split(key, 16)
    s = 0.1
    H, E, V = HIDDEN_DIM, EMB_DIM, OUTPUT_DIM
    p = {
        "emb":   s * jax.random.normal(ks[0], (V, E), jnp.float32),
        # attention: Linear(2H -> H) split into [hidden-part | encoder-part], plus v: Linear(H -> 1)
        "wah":   s * jax.random.normal(ks[1], (H, H), jnp.float32),
        "wae":   s * jax.random.normal(ks[2], (H, H), jnp.float32),
        "ba":    s * jax.random.normal(ks[3], (1, H), jnp.float32),
        "va":    s * jax.random.normal(ks[4], (H, 1), jnp.float32),
        # LSTM layer 0: W_ih (4H, E+H) split into emb / context parts
        "wih0e": s * jax.random.normal(ks[5], (4 * H, E), jnp.float32),
        "wih0c": s * jax.random.normal(ks[6], (4 * H, H), jnp.float32),
        "whh0":  s * jax.random.normal(ks[7], (4 * H, H), jnp.float32),
        "bih0":  s * jax.random.normal(ks[8], (1, 4 * H), jnp.float32),
        "bhh0":  s * jax.random.normal(ks[9], (1, 4 * H), jnp.float32),
        # LSTM layer 1
        "wih1":  s * jax.random.normal(ks[10], (4 * H, H), jnp.float32),
        "whh1":  s * jax.random.normal(ks[11], (4 * H, H), jnp.float32),
        "bih1":  s * jax.random.normal(ks[12], (1, 4 * H), jnp.float32),
        "bhh1":  s * jax.random.normal(ks[13], (1, 4 * H), jnp.float32),
        # fc_out: Linear(H -> V)
        "wout":  s * jax.random.normal(ks[14], (V, H), jnp.float32),
        "bout":  s * jax.random.normal(ks[15], (1, V), jnp.float32),
    }
    return p


def pack_params(p):
    """Pack PyTorch-layout params into 3 lane-dense, pre-transposed (in,out) buffers."""
    # attention pack (lane width = H): [wah^T | wae^T | ba | va^T]
    pattn = jnp.concatenate([p["wah"].T, p["wae"].T, p["ba"], p["va"].T], axis=0)   # (2H+2, H)
    # LSTM pack (lane width = 4H): [W0^T | W1^T | b0 | b1], biases pre-summed
    w0t = jnp.concatenate([p["wih0e"], p["wih0c"], p["whh0"]], axis=1).T            # (E+2H, 4H)
    w1t = jnp.concatenate([p["wih1"], p["whh1"]], axis=1).T                         # (2H, 4H)
    b0 = p["bih0"] + p["bhh0"]
    b1 = p["bih1"] + p["bhh1"]
    plstm = jnp.concatenate([w0t, w1t, b0, b1], axis=0)                             # (E+4H+2, 4H)
    # fc_out pack (lane width = V): [wout^T | bout]
    pout = jnp.concatenate([p["wout"].T, p["bout"]], axis=0)                        # (H+1, V)
    return pattn, plstm, pout


def decoder_forward(tokens, hidden, cell, encoder_outputs, params):
    B = tokens.shape[0]
    L, _, H = hidden.shape
    S = encoder_outputs.shape[1]
    V, E = params["emb"].shape
    assert L == 2, "kernel is written for exactly 2 LSTM layers"

    pattn, plstm, pout = pack_params(params)
    tok = tokens[:, 0].astype(jnp.int32)                                 # (B,)   -> SMEM
    hc = jnp.concatenate([hidden.reshape(L * B, H),
                          cell.reshape(L * B, H)], axis=0)               # (2LB, H)
    enc_flat = encoder_outputs.reshape(B * S, H)                         # (B*S, H)

    kernel = functools.partial(decoder_kernel, B, S, H, E, V)
    vmem = pltpu.MemorySpace.VMEM
    smem = pltpu.MemorySpace.SMEM
    pred, hc_new = pl.pallas_call(
        kernel,
        out_shape=(jax.ShapeDtypeStruct((B, V), jnp.float32),            # prediction (time dim squeezed)
                   jax.ShapeDtypeStruct((2 * L * B, H), jnp.float32)),   # merged new h/c
        in_specs=[pl.BlockSpec(memory_space=smem)]                       # tokens
                 + [pl.BlockSpec(memory_space=vmem)] * 6,                # hc, enc, emb, pattn, plstm, pout
        out_specs=(pl.BlockSpec(memory_space=vmem),
                   pl.BlockSpec(memory_space=vmem)),
    )(tok, hc, enc_flat, params["emb"], pattn, plstm, pout)

    h_new = hc_new[:L * B].reshape(L, B, H)
    c_new = hc_new[L * B:].reshape(L, B, H)
    return pred[:, None, :], h_new, c_new   # (B, 1, V), (L, B, H), (L, B, H)


def decoder_ref(tokens, hidden, cell, enc, p):
    """Pure-JAX reference mirroring the PyTorch forward (inference mode)."""
    H = HIDDEN_DIM
    emb = p["emb"][tokens[:, 0]]                                  # (B, E)
    h_top = hidden[-1]
    hp = h_top @ p["wah"].T
    ep = jnp.einsum("bsh,kh->bsk", enc, p["wae"])
    energy = jnp.tanh(hp[:, None, :] + ep + p["ba"])
    scores = jnp.einsum("bsh,h->bs", energy, p["va"][:, 0])
    w = jax.nn.softmax(scores, axis=1)
    ctx = jnp.einsum("bs,bsh->bh", w, enc)

    def lstm_cell(x, h, c, wih, whh, bih, bhh):
        g = x @ wih.T + bih[0] + h @ whh.T + bhh[0]
        i = jax.nn.sigmoid(g[:, 0 * H:1 * H])
        f = jax.nn.sigmoid(g[:, 1 * H:2 * H])
        gg = jnp.tanh(g[:, 2 * H:3 * H])
        o = jax.nn.sigmoid(g[:, 3 * H:4 * H])
        cn = f * c + i * gg
        hn = o * jnp.tanh(cn)
        return hn, cn

    x0 = jnp.concatenate([emb, ctx], axis=1)
    wih0 = jnp.concatenate([p["wih0e"], p["wih0c"]], axis=1)
    h0, c0 = lstm_cell(x0, hidden[0], cell[0], wih0, p["whh0"], p["bih0"], p["bhh0"])
    h1, c1 = lstm_cell(h0, hidden[1], cell[1], p["wih1"], p["whh1"], p["bih1"], p["bhh1"])
    pred = h1 @ p["wout"].T + p["bout"][0]
    return pred[:, None, :], jnp.stack([h0, h1]), jnp.stack([c0, c1])


if __name__ == "__main__":
    key = jax.random.PRNGKey(0)
    kp, kt, kh, kc, ke = jax.random.split(key, 5)

    params = init_params(kp)
    tokens = jax.random.randint(kt, (BATCH, 1), 0, OUTPUT_DIM, dtype=jnp.int32)
    hidden = 0.1 * jax.random.normal(kh, (N_LAYERS, BATCH, HIDDEN_DIM), jnp.float32)
    cell = 0.1 * jax.random.normal(kc, (N_LAYERS, BATCH, HIDDEN_DIM), jnp.float32)
    encoder_outputs = 0.1 * jax.random.normal(ke, (BATCH, SRC_LEN, HIDDEN_DIM), jnp.float32)

    pred, h_new, c_new = decoder_forward(tokens, hidden, cell, encoder_outputs, params)
    jax.block_until_ready((pred, h_new, c_new))

    # correctness check against plain-JAX reference
    pred_r, h_r, c_r = decoder_ref(tokens, hidden, cell, encoder_outputs, params)
    assert pred.shape == (BATCH, 1, OUTPUT_DIM)
    assert h_new.shape == (N_LAYERS, BATCH, HIDDEN_DIM)
    assert c_new.shape == (N_LAYERS, BATCH, HIDDEN_DIM)
    np.testing.assert_allclose(np.asarray(pred), np.asarray(pred_r), rtol=1e-3, atol=1e-4)
    np.testing.assert_allclose(np.asarray(h_new), np.asarray(h_r), rtol=1e-3, atol=1e-4)
    np.testing.assert_allclose(np.asarray(c_new), np.asarray(c_r), rtol=1e-3, atol=1e-4)

    print("KERNEL_OK")
</pallas_src>

<mosaic_0001>
module attributes {stable_mosaic.version = 11 : i64} {
  func.func @decoder_kernel(%arg0: memref<2xi32, #tpu.memory_space<smem>>, %arg1: memref<8x32xf32, #tpu.memory_space<vmem>>, %arg2: memref<16x32xf32, #tpu.memory_space<vmem>>, %arg3: memref<32x16xf32, #tpu.memory_space<vmem>>, %arg4: memref<66x32xf32, #tpu.memory_space<vmem>>, %arg5: memref<146x128xf32, #tpu.memory_space<vmem>>, %arg6: memref<33x32xf32, #tpu.memory_space<vmem>>, %arg7: memref<2x32xf32, #tpu.memory_space<vmem>>, %arg8: memref<8x32xf32, #tpu.memory_space<vmem>>) attributes {dimension_semantics = [], scalar_prefetch = 0 : i64, scratch_operands = 0 : i64, tpu.core_type = #tpu.core_type<tc>} {
    %c0 = arith.constant 0 : index
    %0 = memref.load %arg0[%c0] : memref<2xi32, #tpu.memory_space<smem>>
    %1 = arith.index_cast %0 : i32 to index
    %c0_0 = arith.constant 0 : index
    %2 = vector.load %arg3[%1, %c0_0] : memref<32x16xf32, #tpu.memory_space<vmem>>, vector<1x16xf32>
    %c1 = arith.constant 1 : index
    %3 = memref.load %arg0[%c1] : memref<2xi32, #tpu.memory_space<smem>>
    %4 = arith.index_cast %3 : i32 to index
    %c0_1 = arith.constant 0 : index
    %5 = vector.load %arg3[%4, %c0_1] : memref<32x16xf32, #tpu.memory_space<vmem>>, vector<1x16xf32>
    %6 = tpu.concatenate %2, %5 in 0 : vector<1x16xf32>, vector<1x16xf32> -> vector<2x16xf32>
    %c0_2 = arith.constant 0 : index
    %c0_3 = arith.constant 0 : index
    %7 = vector.load %arg1[%c0_2, %c0_3] : memref<8x32xf32, #tpu.memory_space<vmem>>, vector<2x32xf32>
    %c2 = arith.constant 2 : index
    %c0_4 = arith.constant 0 : index
    %8 = vector.load %arg1[%c2, %c0_4] : memref<8x32xf32, #tpu.memory_space<vmem>>, vector<2x32xf32>
    %c4 = arith.constant 4 : index
    %c0_5 = arith.constant 0 : index
    %9 = vector.load %arg1[%c4, %c0_5] : memref<8x32xf32, #tpu.memory_space<vmem>>, vector<2x32xf32>
    %c6 = arith.constant 6 : index
    %c0_6 = arith.constant 0 : index
    %10 = vector.load %arg1[%c6, %c0_6] : memref<8x32xf32, #tpu.memory_space<vmem>>, vector<2x32xf32>
    %c0_7 = arith.constant 0 : index
    %c0_8 = arith.constant 0 : index
    %11 = vector.load %arg4[%c0_7, %c0_8] : memref<66x32xf32, #tpu.memory_space<vmem>>, vector<32x32xf32>
    %c32 = arith.constant 32 : index
    %c0_9 = arith.constant 0 : index
    %12 = vector.load %arg4[%c32, %c0_9] : memref<66x32xf32, #tpu.memory_space<vmem>>, vector<32x32xf32>
    %c64 = arith.constant 64 : index
    %c0_10 = arith.constant 0 : index
    %13 = vector.load %arg4[%c64, %c0_10] : memref<66x32xf32, #tpu.memory_space<vmem>>, vector<1x32xf32>
    %c65 = arith.constant 65 : index
    %c0_11 = arith.constant 0 : index
    %14 = vector.load %arg4[%c65, %c0_11] : memref<66x32xf32, #tpu.memory_space<vmem>>, vector<1x32xf32>
    %c0_12 = arith.constant 0 : index
    %c0_13 = arith.constant 0 : index
    %15 = vector.load %arg2[%c0_12, %c0_13] : memref<16x32xf32, #tpu.memory_space<vmem>>, vector<16x32xf32>
    %cst = arith.constant dense<0.000000e+00> : vector<2x32xf32>
    %16 = tpu.matmul %8, %11, %cst {dimension_numbers = #tpu.dot_dimension_numbers<[1], [0], [0], [1], [0, 0, 1, 1], [], []>} : vector<2x32xf32>, vector<32x32xf32>, vector<2x32xf32> -> vector<2x32xf32>
    %cst_14 = arith.constant dense<0.000000e+00> : vector<16x32xf32>
    %17 = tpu.matmul %15, %12, %cst_14 {dimension_numbers = #tpu.dot_dimension_numbers<[1], [0], [0], [1], [0, 0, 1, 1], [], []>} : vector<16x32xf32>, vector<32x32xf32>, vector<16x32xf32> -> vector<16x32xf32>
    %18 = vector.shape_cast %17 : vector<16x32xf32> to vector<2x8x32xf32>
    %19 = vector.shape_cast %16 : vector<2x32xf32> to vector<2x1x32xf32>
    %20 = vector.broadcast %19 : vector<2x1x32xf32> to vector<2x8x32xf32>
    %21 = arith.addf %18, %20 : vector<2x8x32xf32>
    %22 = vector.shape_cast %13 : vector<1x32xf32> to vector<1x1x32xf32>
    %23 = vector.broadcast %22 : vector<1x1x32xf32> to vector<2x8x32xf32>
    %24 = arith.addf %21, %23 : vector<2x8x32xf32>
    %25 = math.tanh %24 : vector<2x8x32xf32>
    %26 = vector.shape_cast %14 : vector<1x32xf32> to vector<1x1x32xf32>
    %27 = vector.broadcast %26 : vector<1x1x32xf32> to vector<2x8x32xf32>
    %28 = arith.mulf %25, %27 : vector<2x8x32xf32>
    %cst_15 = arith.constant dense<0.000000e+00> : vector<2x8xf32>
    %29 = vector.multi_reduction <add>, %28, %cst_15 [2] : vector<2x8x32xf32> to vector<2x8xf32>
    %cst_16 = arith.constant dense<0xFF800000> : vector<2xf32>
    %30 = vector.multi_reduction <maximumf>, %29, %cst_16 [1] : vector<2x8xf32> to vector<2xf32>
    %31 = vector.shape_cast %30 : vector<2xf32> to vector<2x1xf32>
    %32 = vector.broadcast %31 : vector<2x1xf32> to vector<2x8xf32>
    %33 = arith.subf %29, %32 : vector<2x8xf32>
    %34 = math.exp %33 : vector<2x8xf32>
    %cst_17 = arith.constant dense<0.000000e+00> : vector<2xf32>
    %35 = vector.multi_reduction <add>, %34, %cst_17 [1] : vector<2x8xf32> to vector<2xf32>
    %36 = vector.shape_cast %35 : vector<2xf32> to vector<2x1xf32>
    %37 = vector.broadcast %36 : vector<2x1xf32> to vector<2x8xf32>
    %38 = arith.divf %34, %37 : vector<2x8xf32>
    %39 = vector.extract_strided_slice %38 {offsets = [0, 0], sizes = [1, 8], strides = [1, 1]} : vector<2x8xf32> to vector<1x8xf32>
    %40 = vector.extract_strided_slice %15 {offsets = [0, 0], sizes = [8, 32], strides = [1, 1]} : vector<16x32xf32> to vector<8x32xf32>
    %cst_18 = arith.constant dense<0.000000e+00> : vector<1x32xf32>
    %41 = tpu.matmul %39, %40, %cst_18 {dimension_numbers = #tpu.dot_dimension_numbers<[1], [0], [0], [1], [0, 0, 1, 1], [], []>} : vector<1x8xf32>, vector<8x32xf32>, vector<1x32xf32> -> vector<1x32xf32>
    %42 = vector.extract_strided_slice %38 {offsets = [1, 0], sizes = [1, 8], strides = [1, 1]} : vector<2x8xf32> to vector<1x8xf32>
    %43 = vector.extract_strided_slice %15 {offsets = [8, 0], sizes = [8, 32], strides = [1, 1]} : vector<16x32xf32> to vector<8x32xf32>
    %cst_19 = arith.constant dense<0.000000e+00> : vector<1x32xf32>
    %44 = tpu.matmul %42, %43, %cst_19 {dimension_numbers = #tpu.dot_dimension_numbers<[1], [0], [0], [1], [0, 0, 1, 1], [], []>} : vector<1x8xf32>, vector<8x32xf32>, vector<1x32xf32> -> vector<1x32xf32>
    %45 = tpu.concatenate %41, %44 in 0 : vector<1x32xf32>, vector<1x32xf32> -> vector<2x32xf32>
    %c0_20 = arith.constant 0 : index
    %c0_21 = arith.constant 0 : index
    %46 = vector.load %arg5[%c0_20, %c0_21] : memref<146x128xf32, #tpu.memory_space<vmem>>, vector<80x128xf32>
    %c80 = arith.constant 80 : index
    %c0_22 = arith.constant 0 : index
    %47 = vector.load %arg5[%c80, %c0_22] : memref<146x128xf32, #tpu.memory_space<vmem>>, vector<64x128xf32>
    %c144 = arith.constant 144 : index
    %c0_23 = arith.constant 0 : index
    %48 = vector.load %arg5[%c144, %c0_23] : memref<146x128xf32, #tpu.memory_space<vmem>>, vector<1x128xf32>
    %c145 = arith.constant 145 : index
    %c0_24 = arith.constant 0 : index
    %49 = vector.load %arg5[%c145, %c0_24] : memref<146x128xf32, #tpu.memory_space<vmem>>, vector<1x128xf32>
    %50 = tpu.concatenate %6, %45, %7 in 1 : vector<2x16xf32>, vector<2x32xf32>, vector<2x32xf32> -> vector<2x80xf32>
    %cst_25 = arith.constant dense<0.000000e+00> : vector<2x128xf32>
    %51 = tpu.matmul %50, %46, %cst_25 {dimension_numbers = #tpu.dot_dimension_numbers<[1], [0], [0], [1], [0, 0, 1, 1], [], []>} : vector<2x80xf32>, vector<80x128xf32>, vector<2x128xf32> -> vector<2x128xf32>
    %52 = vector.broadcast %48 : vector<1x128xf32> to vector<2x128xf32>
    %53 = arith.addf %51, %52 : vector<2x128xf32>
    %54 = vector.extract_strided_slice %53 {offsets = [0, 0], sizes = [2, 32], strides = [1, 1]} : vector<2x128xf32> to vector<2x32xf32>
    %55 = arith.negf %54 : vector<2x32xf32>
    %56 = math.exp %55 : vector<2x32xf32>
    %cst_26 = arith.constant 1.000000e+00 : f32
    %57 = vector.broadcast %cst_26 : f32 to vector<2x32xf32>
    %58 = arith.addf %57, %56 : vector<2x32xf32>
    %59 = arith.divf %57, %58 : vector<2x32xf32>
    %60 = vector.extract_strided_slice %53 {offsets = [0, 32], sizes = [2, 32], strides = [1, 1]} : vector<2x128xf32> to vector<2x32xf32>
    %61 = arith.negf %60 : vector<2x32xf32>
    %62 = math.exp %61 : vector<2x32xf32>
    %cst_27 = arith.constant 1.000000e+00 : f32
    %63 = vector.broadcast %cst_27 : f32 to vector<2x32xf32>
    %64 = arith.addf %63, %62 : vector<2x32xf32>
    %65 = arith.divf %63, %64 : vector<2x32xf32>
    %66 = vector.extract_strided_slice %53 {offsets = [0, 64], sizes = [2, 32], strides = [1, 1]} : vector<2x128xf32> to vector<2x32xf32>
    %67 = math.tanh %66 : vector<2x32xf32>
    %68 = vector.extract_strided_slice %53 {offsets = [0, 96], sizes = [2, 32], strides = [1, 1]} : vector<2x128xf32> to vector<2x32xf32>
    %69 = arith.negf %68 : vector<2x32xf32>
    %70 = math.exp %69 : vector<2x32xf32>
    %cst_28 = arith.constant 1.000000e+00 : f32
    %71 = vector.broadcast %cst_28 : f32 to vector<2x32xf32>
    %72 = arith.addf %71, %70 : vector<2x32xf32>
    %73 = arith.divf %71, %72 : vector<2x32xf32>
    %74 = arith.mulf %65, %9 : vector<2x32xf32>
    %75 = arith.mulf %59, %67 : vector<2x32xf32>
    %76 = arith.addf %74, %75 : vector<2x32xf32>
    %77 = math.tanh %76 : vector<2x32xf32>
    %78 = arith.mulf %73, %77 : vector<2x32xf32>
    %79 = tpu.concatenate %78, %8 in 1 : vector<2x32xf32>, vector<2x32xf32> -> vector<2x64xf32>
    %cst_29 = arith.constant dense<0.000000e+00> : vector<2x128xf32>
    %80 = tpu.matmul %79, %47, %cst_29 {dimension_numbers = #tpu.dot_dimension_numbers<[1], [0], [0], [1], [0, 0, 1, 1], [], []>} : vector<2x64xf32>, vector<64x128xf32>, vector<2x128xf32> -> vector<2x128xf32>
    %81 = vector.broadcast %49 : vector<1x128xf32> to vector<2x128xf32>
    %82 = arith.addf %80, %81 : vector<2x128xf32>
    %83 = vector.extract_strided_slice %82 {offsets = [0, 0], sizes = [2, 32], strides = [1, 1]} : vector<2x128xf32> to vector<2x32xf32>
    %84 = arith.negf %83 : vector<2x32xf32>
    %85 = math.exp %84 : vector<2x32xf32>
    %cst_30 = arith.constant 1.000000e+00 : f32
    %86 = vector.broadcast %cst_30 : f32 to vector<2x32xf32>
    %87 = arith.addf %86, %85 : vector<2x32xf32>
    %88 = arith.divf %86, %87 : vector<2x32xf32>
    %89 = vector.extract_strided_slice %82 {offsets = [0, 32], sizes = [2, 32], strides = [1, 1]} : vector<2x128xf32> to vector<2x32xf32>
    %90 = arith.negf %89 : vector<2x32xf32>
    %91 = math.exp %90 : vector<2x32xf32>
    %cst_31 = arith.constant 1.000000e+00 : f32
    %92 = vector.broadcast %cst_31 : f32 to vector<2x32xf32>
    %93 = arith.addf %92, %91 : vector<2x32xf32>
    %94 = arith.divf %92, %93 : vector<2x32xf32>
    %95 = vector.extract_strided_slice %82 {offsets = [0, 64], sizes = [2, 32], strides = [1, 1]} : vector<2x128xf32> to vector<2x32xf32>
    %96 = math.tanh %95 : vector<2x32xf32>
    %97 = vector.extract_strided_slice %82 {offsets = [0, 96], sizes = [2, 32], strides = [1, 1]} : vector<2x128xf32> to vector<2x32xf32>
    %98 = arith.negf %97 : vector<2x32xf32>
    %99 = math.exp %98 : vector<2x32xf32>
    %cst_32 = arith.constant 1.000000e+00 : f32
    %100 = vector.broadcast %cst_32 : f32 to vector<2x32xf32>
    %101 = arith.addf %100, %99 : vector<2x32xf32>
    %102 = arith.divf %100, %101 : vector<2x32xf32>
    %103 = arith.mulf %94, %10 : vector<2x32xf32>
    %104 = arith.mulf %88, %96 : vector<2x32xf32>
    %105 = arith.addf %103, %104 : vector<2x32xf32>
    %106 = math.tanh %105 : vector<2x32xf32>
    %107 = arith.mulf %102, %106 : vector<2x32xf32>
    %c0_33 = arith.constant 0 : index
    %c0_34 = arith.constant 0 : index
    %108 = vector.load %arg6[%c0_33, %c0_34] : memref<33x32xf32, #tpu.memory_space<vmem>>, vector<32x32xf32>
    %c32_35 = arith.constant 32 : index
    %c0_36 = arith.constant 0 : index
    %109 = vector.load %arg6[%c32_35, %c0_36] : memref<33x32xf32, #tpu.memory_space<vmem>>, vector<1x32xf32>
    %cst_37 = arith.constant dense<0.000000e+00> : vector<2x32xf32>
    %110 = tpu.matmul %107, %108, %cst_37 {dimension_numbers = #tpu.dot_dimension_numbers<[1], [0], [0], [1], [0, 0, 1, 1], [], []>} : vector<2x32xf32>, vector<32x32xf32>, vector<2x32xf32> -> vector<2x32xf32>
    %111 = vector.broadcast %109 : vector<1x32xf32> to vector<2x32xf32>
    %112 = arith.addf %110, %111 : vector<2x32xf32>
    %c0_38 = arith.constant 0 : index
    %c0_39 = arith.constant 0 : index
    %113 = vector.load %arg7[%c0_38, %c0_39] : memref<2x32xf32, #tpu.memory_space<vmem>>, vector<2x32xf32>
    tpu.vector_store %arg7[%c0_38, %c0_39], %112 {strides = array<i32>} : memref<2x32xf32, #tpu.memory_space<vmem>>, vector<2x32xf32>,
    %114 = tpu.concatenate %78, %107, %76, %105 in 0 : vector<2x32xf32>, vector<2x32xf32>, vector<2x32xf32>, vector<2x32xf32> -> vector<8x32xf32>
    %c0_40 = arith.constant 0 : index
    %c0_41 = arith.constant 0 : index
    %115 = vector.load %arg8[%c0_40, %c0_41] : memref<8x32xf32, #tpu.memory_space<vmem>>, vector<8x32xf32>
    tpu.vector_store %arg8[%c0_40, %c0_41], %114 {strides = array<i32>} : memref<8x32xf32, #tpu.memory_space<vmem>>, vector<8x32xf32>,
    return
  }
}

</mosaic_0001>

<llo_original>
// kernel: tpu_custom_call.1
$region0: #{tpu_custom_call.1}
  #allocation0 [shape = 'u32[]', space=smem, size = 0x4, offset = 0x4, fixed_abs, tag = 'smem constant byte address 0x4 - core index']
  #allocation1 [shape = 'u32[144,128]{1,0:T(1,128)}', space=vmem, size = 0x12000, scoped, tag = 'internal scratch']
  %s0 = inlined_call_operand.vmem [shape: s32[2], index: 0, kind: input, shape index: {}]
  %s1 = inlined_call_operand.vmem [shape: f32[8,32], index: 1, kind: input, shape index: {}]
  %s2 = inlined_call_operand.vmem [shape: f32[16,32], index: 2, kind: input, shape index: {}]
  %s3 = inlined_call_operand.vmem [shape: f32[32,16], index: 3, kind: input, shape index: {}]
  %s4 = inlined_call_operand.vmem [shape: f32[66,32], index: 4, kind: input, shape index: {}]
  %s5 = inlined_call_operand.vmem [shape: f32[146,128], index: 5, kind: input, shape index: {}]
  %s6 = inlined_call_operand.vmem [shape: f32[33,32], index: 6, kind: input, shape index: {}]
  %s7 = inlined_call_operand.hbm [shape: f32[2,32], index: 7, kind: output, shape index: {0}]
  %s8 = inlined_call_operand.hbm [shape: f32[8,32], index: 8, kind: output, shape index: {1}]
  %9 = xla_tuple %s7, %s8
  %s10 = sld [smem:[#allocation0]]
  $region50: #{tpu_custom_call.1} parent=0
    _
  %s12 = ssub.s32 1, %s10
  %s13 = scalar_select 0, %s12, %s10
  $region1: #{tpu_custom_call.1} parent=0
    #allocation2 [shape = 'u8[512]{0}', space=smem, size = 0x200, scoped, tag = 'input window, operand 0, single buffered']
    #allocation3 [shape = 's32[1]{0}', space=sflag, size = 0x4, scoped, tag = 'scoped memory for tpu_custom_call.1']
    #allocation4 [shape = 's32[1]{0}', space=sflag, size = 0x4, scoped, tag = 'scoped memory for tpu_custom_call.1']
    #allocation5 [shape = 'u8[1024]{0}', space=vmem, size = 0x400, scoped, tag = 'output window, operand 0, single buffered']
    #allocation6 [shape = 'u8[4096]{0}', space=vmem, size = 0x1000, scoped, tag = 'output window, operand 1, single buffered']
    #allocation7 [shape = 's32[1]{0}', space=sflag, size = 0x4, scoped, tag = 'scoped memory for tpu_custom_call.1']
    %14 = vsyncpa [#allocation4], 0
    %15 = vsyncpa [#allocation3], 0
    %16 = vsyncpa [#allocation7], 0
    // Predicated region
    $region2: #{tpu_custom_call.1} parent=1 // pred_check
      _
    $region3: #{tpu_custom_call.1} parent=1 // pred_check_branch
      %18 = sbr.rel (0) target = $region5
    $region4: #{tpu_custom_call.1} parent=1 // pred_region
      %s20 = ssub.s32 16, 16
      %21 = vsyncadd [#allocation4], %s20
      %s23 = sshll.u32 %s0, 4
      %s24 = int_to_ptr.vmem [resolvable:$true] %s23
      %26 = dma.vmem_to_smem %s24, 16, [#allocation2], [#allocation4]
    $region5: #{tpu_custom_call.1} parent=1 // pred_fallthru
      _
    // Predicated region
    $region6: #{tpu_custom_call.1} parent=1 // pred_check
      _
    $region7: #{tpu_custom_call.1} parent=1 // pred_check_branch
      %28 = sbr.rel (0) target = $region9
    $region8: #{tpu_custom_call.1} parent=1 // pred_region
      _
    $region9: #{tpu_custom_call.1} parent=1 // pred_fallthru
      _
    // Predicated region
    $region10: #{tpu_custom_call.1} parent=1 // pred_check
      _
    $region11: #{tpu_custom_call.1} parent=1 // pred_check_branch
      %30 = sbr.rel (0) target = $region13
    $region12: #{tpu_custom_call.1} parent=1 // pred_region
      _
    $region13: #{tpu_custom_call.1} parent=1 // pred_fallthru
      _
    // Predicated region
    $region14: #{tpu_custom_call.1} parent=1 // pred_check
      _
    $region15: #{tpu_custom_call.1} parent=1 // pred_check_branch
      %32 = sbr.rel (0) target = $region17
    $region16: #{tpu_custom_call.1} parent=1 // pred_region
      _
    $region17: #{tpu_custom_call.1} parent=1 // pred_fallthru
      _
    // Predicated region
    $region18: #{tpu_custom_call.1} parent=1 // pred_check
      _
    $region19: #{tpu_custom_call.1} parent=1 // pred_check_branch
      %34 = sbr.rel (0) target = $region21
    $region20: #{tpu_custom_call.1} parent=1 // pred_region
      _
    $region21: #{tpu_custom_call.1} parent=1 // pred_fallthru
      _
    // Predicated region
    $region22: #{tpu_custom_call.1} parent=1 // pred_check
      _
    $region23: #{tpu_custom_call.1} parent=1 // pred_check_branch
      %36 = sbr.rel (0) target = $region25
    $region24: #{tpu_custom_call.1} parent=1 // pred_region
      _
    $region25: #{tpu_custom_call.1} parent=1 // pred_fallthru
      _
    // Predicated region
    $region26: #{tpu_custom_call.1} parent=1 // pred_check
      _
    $region27: #{tpu_custom_call.1} parent=1 // pred_check_branch
      %38 = sbr.rel (0) target = $region29
    $region28: #{tpu_custom_call.1} parent=1 // pred_region
      _
    $region29: #{tpu_custom_call.1} parent=1 // pred_fallthru
      _
    // Predicated region
    $region30: #{tpu_custom_call.1} parent=1 // pred_check
      _
    $region31: #{tpu_custom_call.1} parent=1 // pred_check_branch
      %40 = sbr.rel (0) target = $region33
    $region32: #{tpu_custom_call.1} parent=1 // pred_region
      %41 = dma.done [#allocation4], 16
    $region33: #{tpu_custom_call.1} parent=1 // pred_fallthru
      _
    %42 = sfence
    %s43 = sld [smem:[#allocation2]]
    %s44 = scalar_lea.vmem %s3, %s43
    %v45 = vld [vmem:[%s44] sm:$0x1]
    %s46 = sld [smem:[#allocation2 + $0x1]]
    %s47 = scalar_lea.vmem %s3, %s46
    %v48 = vld [vmem:[%s47] sm:$0x1]
    %v50 = vrot.slane %v48, 7
    %vm52 = vcmask 1040384
    %v53 = vsel %vm52, %v45, %v50
    %v54 = vld [vmem:[%s1] sm:$0x3]
    %v55 = vld [vmem:[%s1 + $0x2] sm:$0x3]
    %v56 = vld [vmem:[%s1 + $0x4] sm:$0x3]
    %v57 = vld [vmem:[%s1 + $0x6] sm:$0x3]
    %v58 = vld [vmem:[%s4] sm:$0xff]
    %v59 = vld [vmem:[%s4 + $0x8] sm:$0xff]
    %v60 = vld [vmem:[%s4 + $0x10] sm:$0xff]
    %v61 = vld [vmem:[%s4 + $0x18] sm:$0xff]
    %v62 = vld [vmem:[%s4 + $0x20] sm:$0xff]
    %v63 = vld [vmem:[%s4 + $0x28] sm:$0xff]
    %v64 = vld [vmem:[%s4 + $0x30] sm:$0xff]
    %v65 = vld [vmem:[%s4 + $0x38] sm:$0xff]
    %v66 = vld [vmem:[%s4 + $0x40] sm:$0x1]
    %v67 = vld [vmem:[%s4 + $0x41] sm:$0x1]
    %v68 = vld [vmem:[%s2] sm:$0xff]
    %v69 = vld [vmem:[%s2 + $0x8] sm:$0xff]
    %vm70 = vcmask 261120
    %v72 = vsel %vm70, %v55, 0
    %74 = vmatprep.subr.mxu0 0.0
    %75 = vmatpush1.msra.mxu0 %v58
    %76 = vmatprep.subr.mxu0 0.0
    %77 = vmatpush1.msra.mxu0 %v59
    %78 = vmatprep.subr.mxu0 0.0
    %79 = vmatpush1.msra.mxu0 %v60
    %80 = vmatprep.subr.mxu0 0.0
    %81 = vmatpush1.msra.mxu0 %v61
    %82 = vmatprep.subr.mxu0 0.0
    %83 = vmatpush1.msra.mxu0 0.0
    %84 = vmatprep.subr.mxu0 0.0
    %85 = vmatpush1.msra.mxu0 0.0
    %86 = vmatprep.subr.mxu0 0.0
    %87 = vmatpush1.msra.mxu0 0.0
    %88 = vmatprep.subr.mxu0 0.0
    %89 = vmatpush1.msra.mxu0 0.0
    %90 = vmatprep.subr.mxu0 0.0
    %91 = vmatpush1.msra.mxu0 0.0
    %92 = vmatprep.subr.mxu0 0.0
    %93 = vmatpush1.msra.mxu0 0.0
    %94 = vmatprep.subr.mxu0 0.0
    %95 = vmatpush1.msra.mxu0 0.0
    %96 = vmatprep.subr.mxu0 0.0
    %97 = vmatpush1.msra.mxu0 0.0
    %98 = vmatprep.subr.mxu0 0.0
    %99 = vmatpush1.msra.mxu0 0.0
    %100 = vmatprep.subr.mxu0 0.0
    %101 = vmatpush1.msra.mxu0 0.0
    %102 = vmatprep.subr.mxu0 0.0
    %103 = vmatpush1.msra.mxu0 0.0
    %104 = vmatprep.subr.mxu0 0.0
    %105 = vmatpush1.msra.mxu0 0.0
    %106 = vmatprep.subr.mxu0 0.0
    %107 = vmatpush1.msra.mxu0 0.0
    %108 = vmatprep.subr.mxu0 0.0
    %109 = vmatpush1.msra.mxu0 0.0
    %110 = vmatprep.subr.mxu0 0.0
    %111 = vmatpush1.msra.mxu0 0.0
    %112 = vmatprep.subr.mxu0 0.0
    %113 = vmatpush1.msra.mxu0 0.0
    %114 = vmatprep.subr.mxu0 0.0
    %115 = vmatpush1.msra.mxu0 0.0
    %116 = vmatprep.subr.mxu0 0.0
    %117 = vmatpush1.msra.mxu0 0.0
    %118 = vmatprep.subr.mxu0 0.0
    %119 = vmatpush1.msra.mxu0 0.0
    %120 = vmatprep.subr.mxu0 0.0
    %121 = vmatpush1.msra.mxu0 0.0
    %122 = vmatprep.subr.mxu0 0.0
    %123 = vmatpush1.msra.mxu0 0.0
    %124 = vmatprep.subr.mxu0 0.0
    %125 = vmatpush1.msra.mxu0 0.0
    %126 = vmatprep.subr.mxu0 0.0
    %127 = vmatpush1.msra.mxu0 0.0
    %128 = vmatprep.subr.mxu0 0.0
    %129 = vmatpush1.msra.mxu0 0.0
    %130 = vmatprep.subr.mxu0 0.0
    %131 = vmatpush1.msra.mxu0 0.0
    %132 = vmatprep.subr.mxu0 0.0
    %133 = vmatpush1.msra.mxu0 0.0
    %134 = vmatprep.subr.mxu0 0.0
    %135 = vmatpush1.msra.mxu0 0.0
    %136 = vmatprep.subr.mxu0 0.0
    %137 = vmatpush1.msra.mxu0 0.0
    %138 = vmatprep.mubr.f32.mxu0 0.0
    %139 = vmatmul.mubr.f32.gmra.mrb[0].mxu0 %v72
    %v140 = vpop.f32.mrb[0].mxu0
    %v141 = vadd.f32 0.0, %v140
    %v142 = vpop.f32.mrb[0].mxu0
    %143 = vdwg.mxu0
    %v145 = vsel %vm70, %v68, 0
    %v148 = vsel %vm70, %v69, 0
    %150 = vmatprep.subr.mxu0 0.0
    %151 = vmatpush1.msra.mxu0 %v62
    %152 = vmatprep.subr.mxu0 0.0
    %153 = vmatpush1.msra.mxu0 %v63
    %154 = vmatprep.subr.mxu0 0.0
    %155 = vmatpush1.msra.mxu0 %v64
    %156 = vmatprep.subr.mxu0 0.0
    %157 = vmatpush1.msra.mxu0 %v65
    %158 = vmatprep.subr.mxu0 0.0
    %159 = vmatpush1.msra.mxu0 0.0
    %160 = vmatprep.subr.mxu0 0.0
    %161 = vmatpush1.msra.mxu0 0.0
    %162 = vmatprep.subr.mxu0 0.0
    %163 = vmatpush1.msra.mxu0 0.0
    %164 = vmatprep.subr.mxu0 0.0
    %165 = vmatpush1.msra.mxu0 0.0
    %166 = vmatprep.subr.mxu0 0.0
    %167 = vmatpush1.msra.mxu0 0.0
    %168 = vmatprep.subr.mxu0 0.0
    %169 = vmatpush1.msra.mxu0 0.0
    %170 = vmatprep.subr.mxu0 0.0
    %171 = vmatpush1.msra.mxu0 0.0
    %172 = vmatprep.subr.mxu0 0.0
    %173 = vmatpush1.msra.mxu0 0.0
    %174 = vmatprep.subr.mxu0 0.0
    %175 = vmatpush1.msra.mxu0 0.0
    %176 = vmatprep.subr.mxu0 0.0
    %177 = vmatpush1.msra.mxu0 0.0
    %178 = vmatprep.subr.mxu0 0.0
    %179 = vmatpush1.msra.mxu0 0.0
    %180 = vmatprep.subr.mxu0 0.0
    %181 = vmatpush1.msra.mxu0 0.0
    %182 = vmatprep.subr.mxu0 0.0
    %183 = vmatpush1.msra.mxu0 0.0
    %184 = vmatprep.subr.mxu0 0.0
    %185 = vmatpush1.msra.mxu0 0.0
    %186 = vmatprep.subr.mxu0 0.0
    %187 = vmatpush1.msra.mxu0 0.0
    %188 = vmatprep.subr.mxu0 0.0
    %189 = vmatpush1.msra.mxu0 0.0
    %190 = vmatprep.subr.mxu0 0.0
    %191 = vmatpush1.msra.mxu0 0.0
    %192 = vmatprep.subr.mxu0 0.0
    %193 = vmatpush1.msra.mxu0 0.0
    %194 = vmatprep.subr.mxu0 0.0
    %195 = vmatpush1.msra.mxu0 0.0
    %196 = vmatprep.subr.mxu0 0.0
    %197 = vmatpush1.msra.mxu0 0.0
    %198 = vmatprep.subr.mxu0 0.0
    %199 = vmatpush1.msra.mxu0 0.0
    %200 = vmatprep.subr.mxu0 0.0
    %201 = vmatpush1.msra.mxu0 0.0
    %202 = vmatprep.subr.mxu0 0.0
    %203 = vmatpush1.msra.mxu0 0.0
    %204 = vmatprep.subr.mxu0 0.0
    %205 = vmatpush1.msra.mxu0 0.0
    %206 = vmatprep.subr.mxu0 0.0
    %207 = vmatpush1.msra.mxu0 0.0
    %208 = vmatprep.subr.mxu0 0.0
    %209 = vmatpush1.msra.mxu0 0.0
    %210 = vmatprep.subr.mxu0 0.0
    %211 = vmatpush1.msra.mxu0 0.0
    %212 = vmatprep.subr.mxu0 0.0
    %213 = vmatpush1.msra.mxu0 0.0
    %214 = vmatprep.mubr.f32.mxu0 0.0
    %215 = vmatmul.mubr.f32.gmra.mrb[0].mxu0 %v145
    %v216 = vpop.f32.mrb[0].mxu0
    %v217 = vadd.f32 0.0, %v216
    %v218 = vpop.f32.mrb[0].mxu0
    %219 = vmatprep.mubr.f32.mxu0 0.0
    %220 = vmatmul.mubr.f32.gmra.mrb[0].mxu0 %v148
    %v221 = vpop.f32.mrb[0].mxu0
    %v222 = vadd.f32 0.0, %v221
    %v223 = vpop.f32.mrb[0].mxu0
    %224 = vdwg.mxu0
    %v227 = vunpack.c.l.s4 1966171168
    %v228 = vunpack.c.0.s8 %v227
    %v229 = vlaneseq
    %v230 = vshrl.u32 %v229, 7
    %v231 = vsub.s32 %v228, %v230
    %v232 = vrot.slane %v141, %v231
    %v233 = vcombine.high %v232, %v232
    %v235 = vunpack.c.l.s4 1966171168
    %v236 = vunpack.c.0.s8 %v235
    %v237 = vlaneseq
    %v238 = vshrl.u32 %v237, 7
    %v239 = vsub.s32 %v236, %v238
    %v240 = vrot.slane %v232, %v239
    %v242 = vunpack.c.l.s4 1966171168
    %v243 = vunpack.c.0.s8 %v242
    %v244 = vlaneseq
    %v245 = vshrl.u32 %v244, 7
    %v246 = vsub.s32 %v243, %v245
    %v247 = vrot.slane %v233, %v246
    %v248 = vlaneseq
    %v249 = vshrl.u32 %v248, 7
    %v250 = vsub.s32 0, %v249
    %v251 = vrot.slane %v240, %v250
    %v252 = vlaneseq
    %v253 = vshrl.u32 %v252, 7
    %v254 = vsub.s32 0, %v253
    %v255 = vrot.slane %v247, %v254
    %v258 = vadd.f32 %v217, %v251
    %v259 = vadd.f32 %v222, %v255
    %v260 = vlaneseq
    %v261 = vshrl.u32 %v260, 7
    %v262 = vsub.s32 0, %v261
    %v263 = vrot.slane %v66, %v262
    %v264 = vadd.f32 %v258, %v263
    %v265 = vadd.f32 %v259, %v263
    %v266 = vtanh.pop %v264
    %v267 = vtanh.pop %v265
    %v268 = vlaneseq
    %v269 = vshrl.u32 %v268, 7
    %v270 = vsub.s32 0, %v269
    %v271 = vrot.slane %v67, %v270
    %v272 = vmul.f32 %v266, %v271
    %v273 = vmul.f32 %v267, %v271
    %v274 = vsel %vm70, %v272, 0.0
    %275 = vadd.xlane.f32.xlu0 %v274
    %v276 = vpop.xlane.xlu0 %275
    %v277 = vsel %vm70, %v273, 0.0
    %278 = vadd.xlane.f32.xlu0 %v277
    %v279 = vpop.xlane.xlu0 %278
    %v282 = vlaneseq
    %v283 = vand.u32 %v282, 127
    %v284 = vlaneseq
    %v285 = vshrl.u32 %v284, 7
    %v286 = vsub.s32 %v283, %v285
    %v287 = vrot.slane %v276, %v286
    %v288 = vlaneseq
    %v289 = vshrl.u32 %v288, 7
    %v290 = vsub.s32 %v283, %v289
    %v291 = vrot.slane %v279, %v290
    %vm292 = vcmask 1041409
    %v293 = vsel %vm292, %v291, %v287
    %vm295 = vcmask 58368
    %v296 = vsel %vm295, %v293, -inf
    %297 = vmax.xlane.f32.xlu0 %v296
    %v298 = vpop.xlane.xlu0 %297
    %v300 = vlaneseq
    %v301 = vshrl.u32 %v300, 7
    %v302 = vsub.s32 0, %v301
    %v303 = vrot.slane %v298, %v302
    %v304 = vlaneseq
    %v305 = vshrl.u32 %v304, 7
    %v306 = vsub.s32 1, %v305
    %v307 = vrot.slane %v298, %v306
    %v310 = vsub.f32 %v276, %v303
    %v311 = vsub.f32 %v279, %v307
    %v312 = vmul.f32 %v310, 1.442695
    %v313 = vpow.pop %v312
    %v314 = vmul.f32 %v311, 1.442695
    %v315 = vpow.pop %v314
    %318 = vset.pattern.permute.xlu0 0
    %319 = vperm.xlu0 %318, %v313
    %v320 = vpop.permute.xlu0 %319
    %321 = vset.pattern.permute.xlu0 0
    %322 = vperm.xlu0 %321, %v315
    %v323 = vpop.permute.xlu0 %322
    %v324 = vlaneseq
    %v325 = vshrl.u32 %v324, 7
    %v326 = vsub.s32 %v283, %v325
    %v327 = vrot.slane %v320, %v326
    %v328 = vlaneseq
    %v329 = vshrl.u32 %v328, 7
    %v330 = vsub.s32 %v283, %v329
    %v331 = vrot.slane %v323, %v330
    %v332 = vsel %vm292, %v331, %v327
    %v334 = vsel %vm295, %v332, 0.0
    %335 = vadd.xlane.f32.xlu0 %v334
    %v336 = vpop.xlane.xlu0 %335
    %v338 = vlaneseq
    %v339 = vshrl.u32 %v338, 7
    %v340 = vsub.s32 0, %v339
    %v341 = vrot.slane %v336, %v340
    %v342 = vlaneseq
    %v343 = vshrl.u32 %v342, 7
    %v344 = vsub.s32 1, %v343
    %v345 = vrot.slane %v336, %v344
    %v348 = vrcp.pop %v341
    %v349 = vmul.f32 %v313, %v348
    %v350 = vrcp.pop %v345
    %v351 = vmul.f32 %v315, %v350
    %353 = vset.pattern.permute.xlu0 0
    %354 = vperm.xlu0 %353, %v349
    %v355 = vpop.permute.xlu0 %354
    %v356 = vlaneseq
    %v357 = vshrl.u32 %v356, 7
    %v358 = vsub.s32 %v283, %v357
    %v359 = vrot.slane %v355, %v358
    %vm360 = vcmask 64512
    %v361 = vsel %vm360, %v359, 0
    %363 = vmatprep.subr.mxu0 0.0
    %364 = vmatpush1.msra.mxu0 %v68
    %365 = vmatprep.subr.mxu0 0.0
    %366 = vmatpush1.msra.mxu0 0.0
    %367 = vmatprep.subr.mxu0 0.0
    %368 = vmatpush1.msra.mxu0 0.0
    %369 = vmatprep.subr.mxu0 0.0
    %370 = vmatpush1.msra.mxu0 0.0
    %371 = vmatprep.subr.mxu0 0.0
    %372 = vmatpush1.msra.mxu0 0.0
    %373 = vmatprep.subr.mxu0 0.0
    %374 = vmatpush1.msra.mxu0 0.0
    %375 = vmatprep.subr.mxu0 0.0
    %376 = vmatpush1.msra.mxu0 0.0
    %377 = vmatprep.subr.mxu0 0.0
    %378 = vmatpush1.msra.mxu0 0.0
    %379 = vmatprep.subr.mxu0 0.0
    %380 = vmatpush1.msra.mxu0 0.0
    %381 = vmatprep.subr.mxu0 0.0
    %382 = vmatpush1.msra.mxu0 0.0
    %383 = vmatprep.subr.mxu0 0.0
    %384 = vmatpush1.msra.mxu0 0.0
    %385 = vmatprep.subr.mxu0 0.0
    %386 = vmatpush1.msra.mxu0 0.0
    %387 = vmatprep.subr.mxu0 0.0
    %388 = vmatpush1.msra.mxu0 0.0
    %389 = vmatprep.subr.mxu0 0.0
    %390 = vmatpush1.msra.mxu0 0.0
    %391 = vmatprep.subr.mxu0 0.0
    %392 = vmatpush1.msra.mxu0 0.0
    %393 = vmatprep.subr.mxu0 0.0
    %394 = vmatpush1.msra.mxu0 0.0
    %395 = vmatprep.subr.mxu0 0.0
    %396 = vmatpush1.msra.mxu0 0.0
    %397 = vmatprep.subr.mxu0 0.0
    %398 = vmatpush1.msra.mxu0 0.0
    %399 = vmatprep.subr.mxu0 0.0
    %400 = vmatpush1.msra.mxu0 0.0
    %401 = vmatprep.subr.mxu0 0.0
    %402 = vmatpush1.msra.mxu0 0.0
    %403 = vmatprep.subr.mxu0 0.0
    %404 = vmatpush1.msra.mxu0 0.0
    %405 = vmatprep.subr.mxu0 0.0
    %406 = vmatpush1.msra.mxu0 0.0
    %407 = vmatprep.subr.mxu0 0.0
    %408 = vmatpush1.msra.mxu0 0.0
    %409 = vmatprep.subr.mxu0 0.0
    %410 = vmatpush1.msra.mxu0 0.0
    %411 = vmatprep.subr.mxu0 0.0
    %412 = vmatpush1.msra.mxu0 0.0
    %413 = vmatprep.subr.mxu0 0.0
    %414 = vmatpush1.msra.mxu0 0.0
    %415 = vmatprep.subr.mxu0 0.0
    %416 = vmatpush1.msra.mxu0 0.0
    %417 = vmatprep.subr.mxu0 0.0
    %418 = vmatpush1.msra.mxu0 0.0
    %419 = vmatprep.subr.mxu0 0.0
    %420 = vmatpush1.msra.mxu0 0.0
    %421 = vmatprep.subr.mxu0 0.0
    %422 = vmatpush1.msra.mxu0 0.0
    %423 = vmatprep.subr.mxu0 0.0
    %424 = vmatpush1.msra.mxu0 0.0
    %425 = vmatprep.subr.mxu0 0.0
    %426 = vmatpush1.msra.mxu0 0.0
    %427 = vmatprep.mubr.f32.mxu0 0.0
    %428 = vmatmul.mubr.f32.gmra.mrb[0].mxu0 %v361
    %v429 = vpop.f32.mrb[0].mxu0
    %v430 = vadd.f32 0.0, %v429
    %v431 = vpop.f32.mrb[0].mxu0
    %432 = vdwg.mxu0
    %434 = vset.pattern.permute.xlu0 0
    %435 = vperm.xlu0 %434, %v351
    %v436 = vpop.permute.xlu0 %435
    %v437 = vlaneseq
    %v438 = vshrl.u32 %v437, 7
    %v439 = vsub.s32 %v283, %v438
    %v440 = vrot.slane %v436, %v439
    %v441 = vsel %vm360, %v440, 0
    %443 = vmatprep.subr.mxu0 0.0
    %444 = vmatpush1.msra.mxu0 %v69
    %445 = vmatprep.subr.mxu0 0.0
    %446 = vmatpush1.msra.mxu0 0.0
    %447 = vmatprep.subr.mxu0 0.0
    %448 = vmatpush1.msra.mxu0 0.0
    %449 = vmatprep.subr.mxu0 0.0
    %450 = vmatpush1.msra.mxu0 0.0
    %451 = vmatprep.subr.mxu0 0.0
    %452 = vmatpush1.msra.mxu0 0.0
    %453 = vmatprep.subr.mxu0 0.0
    %454 = vmatpush1.msra.mxu0 0.0
    %455 = vmatprep.subr.mxu0 0.0
    %456 = vmatpush1.msra.mxu0 0.0
    %457 = vmatprep.subr.mxu0 0.0
    %458 = vmatpush1.msra.mxu0 0.0
    %459 = vmatprep.subr.mxu0 0.0
    %460 = vmatpush1.msra.mxu0 0.0
    %461 = vmatprep.subr.mxu0 0.0
    %462 = vmatpush1.msra.mxu0 0.0
    %463 = vmatprep.subr.mxu0 0.0
    %464 = vmatpush1.msra.mxu0 0.0
    %465 = vmatprep.subr.mxu0 0.0
    %466 = vmatpush1.msra.mxu0 0.0
    %467 = vmatprep.subr.mxu0 0.0
    %468 = vmatpush1.msra.mxu0 0.0
    %469 = vmatprep.subr.mxu0 0.0
    %470 = vmatpush1.msra.mxu0 0.0
    %471 = vmatprep.subr.mxu0 0.0
    %472 = vmatpush1.msra.mxu0 0.0
    %473 = vmatprep.subr.mxu0 0.0
    %474 = vmatpush1.msra.mxu0 0.0
    %475 = vmatprep.subr.mxu0 0.0
    %476 = vmatpush1.msra.mxu0 0.0
    %477 = vmatprep.subr.mxu0 0.0
    %478 = vmatpush1.msra.mxu0 0.0
    %479 = vmatprep.subr.mxu0 0.0
    %480 = vmatpush1.msra.mxu0 0.0
    %481 = vmatprep.subr.mxu0 0.0
    %482 = vmatpush1.msra.mxu0 0.0
    %483 = vmatprep.subr.mxu0 0.0
    %484 = vmatpush1.msra.mxu0 0.0
    %485 = vmatprep.subr.mxu0 0.0
    %486 = vmatpush1.msra.mxu0 0.0
    %487 = vmatprep.subr.mxu0 0.0
    %488 = vmatpush1.msra.mxu0 0.0
    %489 = vmatprep.subr.mxu0 0.0
    %490 = vmatpush1.msra.mxu0 0.0
    %491 = vmatprep.subr.mxu0 0.0
    %492 = vmatpush1.msra.mxu0 0.0
    %493 = vmatprep.subr.mxu0 0.0
    %494 = vmatpush1.msra.mxu0 0.0
    %495 = vmatprep.subr.mxu0 0.0
    %496 = vmatpush1.msra.mxu0 0.0
    %497 = vmatprep.subr.mxu0 0.0
    %498 = vmatpush1.msra.mxu0 0.0
    %499 = vmatprep.subr.mxu0 0.0
    %500 = vmatpush1.msra.mxu0 0.0
    %501 = vmatprep.subr.mxu0 0.0
    %502 = vmatpush1.msra.mxu0 0.0
    %503 = vmatprep.subr.mxu0 0.0
    %504 = vmatpush1.msra.mxu0 0.0
    %505 = vmatprep.subr.mxu0 0.0
    %506 = vmatpush1.msra.mxu0 0.0
    %507 = vmatprep.mubr.f32.mxu0 0.0
    %508 = vmatmul.mubr.f32.gmra.mrb[0].mxu0 %v441
    %v509 = vpop.f32.mrb[0].mxu0
    %v510 = vadd.f32 0.0, %v509
    %v511 = vpop.f32.mrb[0].mxu0
    %512 = vdwg.mxu0
    %v514 = vrot.slane %v510, 7
    %v516 = vsel %vm52, %v430, %v514
    %v517 = vld [vmem:[%s5] sm:$0xff]
    %v518 = vld [vmem:[%s5 + $0x8] sm:$0xff]
    %v519 = vld [vmem:[%s5 + $0x10] sm:$0xff]
    %v520 = vld [vmem:[%s5 + $0x18] sm:$0xff]
    %v521 = vld [vmem:[%s5 + $0x20] sm:$0xff]
    %v522 = vld [vmem:[%s5 + $0x28] sm:$0xff]
    %v523 = vld [vmem:[%s5 + $0x30] sm:$0xff]
    %v524 = vld [vmem:[%s5 + $0x38] sm:$0xff]
    %v525 = vld [vmem:[%s5 + $0x40] sm:$0xff]
    %v526 = vld [vmem:[%s5 + $0x48] sm:$0xff]
    %v527 = vld [vmem:[%s5 + $0x50] sm:$0xff]
    %v528 = vld [vmem:[%s5 + $0x58] sm:$0xff]
    %v529 = vld [vmem:[%s5 + $0x60] sm:$0xff]
    %v530 = vld [vmem:[%s5 + $0x68] sm:$0xff]
    %v531 = vld [vmem:[%s5 + $0x70] sm:$0xff]
    %v532 = vld [vmem:[%s5 + $0x78] sm:$0xff]
    %v533 = vld [vmem:[%s5 + $0x80] sm:$0xff]
    %v534 = vld [vmem:[%s5 + $0x88] sm:$0xff]
    %v535 = vld [vmem:[%s5 + $0x90] sm:$0x1]
    %v536 = vld [vmem:[%s5 + $0x91] sm:$0x1]
    %538 = vrot.lane.b32.xlu0 %v516, 16
    %v539 = vpop.permute.xlu0 %538
    %542 = vrot.lane.b32.xlu0 %v54, 48
    %v543 = vpop.permute.xlu0 %542
    %vm545 = vcmask 130048
    %v546 = vsel %vm545, %v53, %v539
    %vm547 = vcmask 392192
    %v548 = vsel %vm547, %v546, %v543
    %v549 = vlaneseq
    %v550 = vshrl.u32 %v549, 7
    %v551 = vsub.s32 0, %v550
    %v552 = vrot.slane %v535, %v551
    %vm553 = vcmask 654336
    %v555 = vsel %vm553, %v548, 0
    %557 = vmatprep.subr.mxu0 0.0
    %558 = vmatpush1.msra.mxu0 %v517
    %559 = vmatprep.subr.mxu0 0.0
    %560 = vmatpush1.msra.mxu0 %v518
    %561 = vmatprep.subr.mxu0 0.0
    %562 = vmatpush1.msra.mxu0 %v519
    %563 = vmatprep.subr.mxu0 0.0
    %564 = vmatpush1.msra.mxu0 %v520
    %565 = vmatprep.subr.mxu0 0.0
    %566 = vmatpush1.msra.mxu0 %v521
    %567 = vmatprep.subr.mxu0 0.0
    %568 = vmatpush1.msra.mxu0 %v522
    %569 = vmatprep.subr.mxu0 0.0
    %570 = vmatpush1.msra.mxu0 %v523
    %571 = vmatprep.subr.mxu0 0.0
    %572 = vmatpush1.msra.mxu0 %v524
    %573 = vmatprep.subr.mxu0 0.0
    %574 = vmatpush1.msra.mxu0 %v525
    %575 = vmatprep.subr.mxu0 0.0
    %576 = vmatpush1.msra.mxu0 %v526
    %577 = vmatprep.subr.mxu0 0.0
    %578 = vmatpush1.msra.mxu0 0.0
    %579 = vmatprep.subr.mxu0 0.0
    %580 = vmatpush1.msra.mxu0 0.0
    %581 = vmatprep.subr.mxu0 0.0
    %582 = vmatpush1.msra.mxu0 0.0
    %583 = vmatprep.subr.mxu0 0.0
    %584 = vmatpush1.msra.mxu0 0.0
    %585 = vmatprep.subr.mxu0 0.0
    %586 = vmatpush1.msra.mxu0 0.0
    %587 = vmatprep.subr.mxu0 0.0
    %588 = vmatpush1.msra.mxu0 0.0
    %589 = vmatprep.subr.mxu0 0.0
    %590 = vmatpush1.msra.mxu0 0.0
    %591 = vmatprep.subr.mxu0 0.0
    %592 = vmatpush1.msra.mxu0 0.0
    %593 = vmatprep.subr.mxu0 0.0
    %594 = vmatpush1.msra.mxu0 0.0
    %595 = vmatprep.subr.mxu0 0.0
    %596 = vmatpush1.msra.mxu0 0.0
    %597 = vmatprep.subr.mxu0 0.0
    %598 = vmatpush1.msra.mxu0 0.0
    %599 = vmatprep.subr.mxu0 0.0
    %600 = vmatpush1.msra.mxu0 0.0
    %601 = vmatprep.subr.mxu0 0.0
    %602 = vmatpush1.msra.mxu0 0.0
    %603 = vmatprep.subr.mxu0 0.0
    %604 = vmatpush1.msra.mxu0 0.0
    %605 = vmatprep.subr.mxu0 0.0
    %606 = vmatpush1.msra.mxu0 0.0
    %607 = vmatprep.subr.mxu0 0.0
    %608 = vmatpush1.msra.mxu0 0.0
    %609 = vmatprep.subr.mxu0 0.0
    %610 = vmatpush1.msra.mxu0 0.0
    %611 = vmatprep.subr.mxu0 0.0
    %612 = vmatpush1.msra.mxu0 0.0
    %613 = vmatprep.subr.mxu0 0.0
    %614 = vmatpush1.msra.mxu0 0.0
    %615 = vmatprep.subr.mxu0 0.0
    %616 = vmatpush1.msra.mxu0 0.0
    %617 = vmatprep.subr.mxu0 0.0
    %618 = vmatpush1.msra.mxu0 0.0
    %619 = vmatprep.subr.mxu0 0.0
    %620 = vmatpush1.msra.mxu0 0.0
    %621 = vmatprep.mubr.f32.mxu0 0.0
    %622 = vmatmul.mubr.f32.gmra.mrb[0].mxu0 %v555
    %v623 = vpop.f32.mrb[0].mxu0
    %v624 = vadd.f32 %v552, %v623
    %v625 = vpop.f32.mrb[0].mxu0
    %626 = vdwg.mxu0
    %v627 = vxor.u32 %v624, 2147483648
    %v628 = vmul.f32 %v627, 1.442695
    %v629 = vpow.pop %v628
    %v630 = vadd.f32 %v629, 1.0
    %v631 = vrcp.pop %v630
    %v632 = vmul.f32 1.0, %v631
    %v633 = vtanh.pop %v624
    %635 = vrot.lane.b32.xlu0 %v56, 32
    %v636 = vpop.permute.xlu0 %635
    %v638 = vmul.f32 %v632, %v636
    %640 = vrot.lane.b32.xlu0 %v633, 64
    %v641 = vpop.permute.xlu0 %640
    %v643 = vmul.f32 %v632, %v641
    %645 = vrot.lane.b32.xlu0 %v643, 32
    %v646 = vpop.permute.xlu0 %645
    %v648 = vadd.f32 %v638, %v646
    %v649 = vtanh.pop %v648
    %651 = vrot.lane.b32.xlu0 %v649, 64
    %v652 = vpop.permute.xlu0 %651
    %v654 = vmul.f32 %v632, %v652
    %656 = vrot.lane.b32.xlu0 %v654, 32
    %v657 = vpop.permute.xlu0 %656
    %659 = vrot.lane.b32.xlu0 %v55, 32
    %v660 = vpop.permute.xlu0 %659
    %v662 = vsel %vm70, %v657, %v660
    %v663 = vlaneseq
    %v664 = vshrl.u32 %v663, 7
    %v665 = vsub.s32 0, %v664
    %v666 = vrot.slane %v536, %v665
    %vm667 = vcmask 523264
    %v669 = vsel %vm667, %v662, 0
    %671 = vmatprep.subr.mxu0 0.0
    %672 = vmatpush1.msra.mxu0 %v527
    %673 = vmatprep.subr.mxu0 0.0
    %674 = vmatpush1.msra.mxu0 %v528
    %675 = vmatprep.subr.mxu0 0.0
    %676 = vmatpush1.msra.mxu0 %v529
    %677 = vmatprep.subr.mxu0 0.0
    %678 = vmatpush1.msra.mxu0 %v530
    %679 = vmatprep.subr.mxu0 0.0
    %680 = vmatpush1.msra.mxu0 %v531
    %681 = vmatprep.subr.mxu0 0.0
    %682 = vmatpush1.msra.mxu0 %v532
    %683 = vmatprep.subr.mxu0 0.0
    %684 = vmatpush1.msra.mxu0 %v533
    %685 = vmatprep.subr.mxu0 0.0
    %686 = vmatpush1.msra.mxu0 %v534
    %687 = vmatprep.subr.mxu0 0.0
    %688 = vmatpush1.msra.mxu0 0.0
    %689 = vmatprep.subr.mxu0 0.0
    %690 = vmatpush1.msra.mxu0 0.0
    %691 = vmatprep.subr.mxu0 0.0
    %692 = vmatpush1.msra.mxu0 0.0
    %693 = vmatprep.subr.mxu0 0.0
    %694 = vmatpush1.msra.mxu0 0.0
    %695 = vmatprep.subr.mxu0 0.0
    %696 = vmatpush1.msra.mxu0 0.0
    %697 = vmatprep.subr.mxu0 0.0
    %698 = vmatpush1.msra.mxu0 0.0
    %699 = vmatprep.subr.mxu0 0.0
    %700 = vmatpush1.msra.mxu0 0.0
    %701 = vmatprep.subr.mxu0 0.0
    %702 = vmatpush1.msra.mxu0 0.0
    %703 = vmatprep.subr.mxu0 0.0
    %704 = vmatpush1.msra.mxu0 0.0
    %705 = vmatprep.subr.mxu0 0.0
    %706 = vmatpush1.msra.mxu0 0.0
    %707 = vmatprep.subr.mxu0 0.0
    %708 = vmatpush1.msra.mxu0 0.0
    %709 = vmatprep.subr.mxu0 0.0
    %710 = vmatpush1.msra.mxu0 0.0
    %711 = vmatprep.subr.mxu0 0.0
    %712 = vmatpush1.msra.mxu0 0.0
    %713 = vmatprep.subr.mxu0 0.0
    %714 = vmatpush1.msra.mxu0 0.0
    %715 = vmatprep.subr.mxu0 0.0
    %716 = vmatpush1.msra.mxu0 0.0
    %717 = vmatprep.subr.mxu0 0.0
    %718 = vmatpush1.msra.mxu0 0.0
    %719 = vmatprep.subr.mxu0 0.0
    %720 = vmatpush1.msra.mxu0 0.0
    %721 = vmatprep.subr.mxu0 0.0
    %722 = vmatpush1.msra.mxu0 0.0
    %723 = vmatprep.subr.mxu0 0.0
    %724 = vmatpush1.msra.mxu0 0.0
    %725 = vmatprep.subr.mxu0 0.0
    %726 = vmatpush1.msra.mxu0 0.0
    %727 = vmatprep.subr.mxu0 0.0
    %728 = vmatpush1.msra.mxu0 0.0
    %729 = vmatprep.subr.mxu0 0.0
    %730 = vmatpush1.msra.mxu0 0.0
    %731 = vmatprep.subr.mxu0 0.0
    %732 = vmatpush1.msra.mxu0 0.0
    %733 = vmatprep.subr.mxu0 0.0
    %734 = vmatpush1.msra.mxu0 0.0
    %735 = vmatprep.mubr.f32.mxu0 0.0
    %736 = vmatmul.mubr.f32.gmra.mrb[0].mxu0 %v669
    %v737 = vpop.f32.mrb[0].mxu0
    %v738 = vadd.f32 %v666, %v737
    %v739 = vpop.f32.mrb[0].mxu0
    %740 = vdwg.mxu0
    %v741 = vxor.u32 %v738, 2147483648
    %v742 = vmul.f32 %v741, 1.442695
    %v743 = vpow.pop %v742
    %v744 = vadd.f32 %v743, 1.0
    %v745 = vrcp.pop %v744
    %v746 = vmul.f32 1.0, %v745
    %v747 = vtanh.pop %v738
    %749 = vrot.lane.b32.xlu0 %v57, 32
    %v750 = vpop.permute.xlu0 %749
    %v752 = vmul.f32 %v746, %v750
    %754 = vrot.lane.b32.xlu0 %v747, 64
    %v755 = vpop.permute.xlu0 %754
    %v757 = vmul.f32 %v746, %v755
    %759 = vrot.lane.b32.xlu0 %v757, 32
    %v760 = vpop.permute.xlu0 %759
    %v762 = vadd.f32 %v752, %v760
    %v763 = vtanh.pop %v762
    %765 = vrot.lane.b32.xlu0 %v763, 64
    %v766 = vpop.permute.xlu0 %765
    %v768 = vmul.f32 %v746, %v766
    %v769 = vld [vmem:[%s6] sm:$0xff]
    %v770 = vld [vmem:[%s6 + $0x8] sm:$0xff]
    %v771 = vld [vmem:[%s6 + $0x10] sm:$0xff]
    %v772 = vld [vmem:[%s6 + $0x18] sm:$0xff]
    %v773 = vld [vmem:[%s6 + $0x20] sm:$0x1]
    %v774 = vlaneseq
    %v775 = vshrl.u32 %v774, 7
    %v776 = vsub.s32 0, %v775
    %v777 = vrot.slane %v773, %v776
    %779 = vrot.lane.b32.xlu0 %v768, 32
    %v780 = vpop.permute.xlu0 %779
    %v781 = vsel %vm70, %v780, 0
    %783 = vmatprep.subr.mxu0 0.0
    %784 = vmatpush1.msra.mxu0 %v769
    %785 = vmatprep.subr.mxu0 0.0
    %786 = vmatpush1.msra.mxu0 %v770
    %787 = vmatprep.subr.mxu0 0.0
    %788 = vmatpush1.msra.mxu0 %v771
    %789 = vmatprep.subr.mxu0 0.0
    %790 = vmatpush1.msra.mxu0 %v772
    %791 = vmatprep.subr.mxu0 0.0
    %792 = vmatpush1.msra.mxu0 0.0
    %793 = vmatprep.subr.mxu0 0.0
    %794 = vmatpush1.msra.mxu0 0.0
    %795 = vmatprep.subr.mxu0 0.0
    %796 = vmatpush1.msra.mxu0 0.0
    %797 = vmatprep.subr.mxu0 0.0
    %798 = vmatpush1.msra.mxu0 0.0
    %799 = vmatprep.subr.mxu0 0.0
    %800 = vmatpush1.msra.mxu0 0.0
    %801 = vmatprep.subr.mxu0 0.0
    %802 = vmatpush1.msra.mxu0 0.0
    %803 = vmatprep.subr.mxu0 0.0
    %804 = vmatpush1.msra.mxu0 0.0
    %805 = vmatprep.subr.mxu0 0.0
    %806 = vmatpush1.msra.mxu0 0.0
    %807 = vmatprep.subr.mxu0 0.0
    %808 = vmatpush1.msra.mxu0 0.0
    %809 = vmatprep.subr.mxu0 0.0
    %810 = vmatpush1.msra.mxu0 0.0
    %811 = vmatprep.subr.mxu0 0.0
    %812 = vmatpush1.msra.mxu0 0.0
    %813 = vmatprep.subr.mxu0 0.0
    %814 = vmatpush1.msra.mxu0 0.0
    %815 = vmatprep.subr.mxu0 0.0
    %816 = vmatpush1.msra.mxu0 0.0
    %817 = vmatprep.subr.mxu0 0.0
    %818 = vmatpush1.msra.mxu0 0.0
    %819 = vmatprep.subr.mxu0 0.0
    %820 = vmatpush1.msra.mxu0 0.0
    %821 = vmatprep.subr.mxu0 0.0
    %822 = vmatpush1.msra.mxu0 0.0
    %823 = vmatprep.subr.mxu0 0.0
    %824 = vmatpush1.msra.mxu0 0.0
    %825 = vmatprep.subr.mxu0 0.0
    %826 = vmatpush1.msra.mxu0 0.0
    %827 = vmatprep.subr.mxu0 0.0
    %828 = vmatpush1.msra.mxu0 0.0
    %829 = vmatprep.subr.mxu0 0.0
    %830 = vmatpush1.msra.mxu0 0.0
    %831 = vmatprep.subr.mxu0 0.0
    %832 = vmatpush1.msra.mxu0 0.0
    %833 = vmatprep.subr.mxu0 0.0
    %834 = vmatpush1.msra.mxu0 0.0
    %835 = vmatprep.subr.mxu0 0.0
    %836 = vmatpush1.msra.mxu0 0.0
    %837 = vmatprep.subr.mxu0 0.0
    %838 = vmatpush1.msra.mxu0 0.0
    %839 = vmatprep.subr.mxu0 0.0
    %840 = vmatpush1.msra.mxu0 0.0
    %841 = vmatprep.subr.mxu0 0.0
    %842 = vmatpush1.msra.mxu0 0.0
    %843 = vmatprep.subr.mxu0 0.0
    %844 = vmatpush1.msra.mxu0 0.0
    %845 = vmatprep.subr.mxu0 0.0
    %846 = vmatpush1.msra.mxu0 0.0
    %847 = vmatprep.mubr.f32.mxu0 0.0
    %848 = vmatmul.mubr.f32.gmra.mrb[0].mxu0 %v781
    %v849 = vpop.f32.mrb[0].mxu0
    %v850 = vadd.f32 %v777, %v849
    %v851 = vpop.f32.mrb[0].mxu0
    %852 = vdwg.mxu0
    %vm853 = vcmask 254976
    %854 = vst.msk [vmem:[#allocation5] sm:$0x3] %vm853, %v850
    %v855 = vrot.slane %v768, 6
    %v858 = vrot.slane %v648, 4
    %859 = vrot.lane.b32.xlu0 %v858, 64
    %v860 = vpop.permute.xlu0 %859
    %v863 = vrot.slane %v762, 2
    %864 = vrot.lane.b32.xlu0 %v863, 64
    %v865 = vpop.permute.xlu0 %864
    %vm867 = vcmask 1041408
    %v868 = vsel %vm867, %v654, %v855
    %vm869 = vcmask 1043456
    %v870 = vsel %vm869, %v868, %v860
    %vm871 = vcmask 1045504
    %v872 = vsel %vm871, %v870, %v865
    %874 = vrot.lane.b32.xlu0 %v872, 32
    %v875 = vpop.permute.xlu0 %874
    %877 = vst.msk [vmem:[#allocation6] sm:$0xff] %vm70, %v875
    // Predicated region
    $region34: #{tpu_custom_call.1} parent=1 // pred_check
      _
    $region35: #{tpu_custom_call.1} parent=1 // pred_check_branch
      %879 = sbr.rel (0) target = $region37
    $region36: #{tpu_custom_call.1} parent=1 // pred_region
      %s881 = ssub.s32 32, 32
      %882 = vsyncadd [#allocation3], %s881
      %s884 = sshll.u32 [#allocation5], 4
      %s885 = int_to_ptr.vmem [resolvable:$true] %s884
      %887 = dma.vmem_to_hbm [thread:$0]  %s885, 32, %s7, [#allocation3]
    $region37: #{tpu_custom_call.1} parent=1 // pred_fallthru
      _
    // Predicated region
    $region38: #{tpu_custom_call.1} parent=1 // pred_check
      _
    $region39: #{tpu_custom_call.1} parent=1 // pred_check_branch
      %889 = sbr.rel (0) target = $region41
    $region40: #{tpu_custom_call.1} parent=1 // pred_region
      %s891 = ssub.s32 128, 128
      %892 = vsyncadd [#allocation7], %s891
      %s894 = sshll.u32 [#allocation6], 4
      %s895 = int_to_ptr.vmem [resolvable:$true] %s894
      %897 = dma.vmem_to_hbm [thread:$0]  %s895, 128, %s8, [#allocation7]
    $region41: #{tpu_custom_call.1} parent=1 // pred_fallthru
      _
    // Predicated region
    $region42: #{tpu_custom_call.1} parent=1 // pred_check
      _
    $region43: #{tpu_custom_call.1} parent=1 // pred_check_branch
      %899 = sbr.rel (0) target = $region45
    $region44: #{tpu_custom_call.1} parent=1 // pred_region
      %900 = dma.done [#allocation3], 32
    $region45: #{tpu_custom_call.1} parent=1 // pred_fallthru
      _
    // Predicated region
    $region46: #{tpu_custom_call.1} parent=1 // pred_check
      _
    $region47: #{tpu_custom_call.1} parent=1 // pred_check_branch
      %902 = sbr.rel (0) target = $region49
    $region48: #{tpu_custom_call.1} parent=1 // pred_region
      %903 = dma.done [#allocation7], 128
    $region49: #{tpu_custom_call.1} parent=1 // pred_fallthru
      _
    %904 = vsyncpa [#allocation3], 1
    %905 = vsyncpa [#allocation7], 1
    %906 = vsyncpa [#allocation4], 1

</llo_original>
